<compile_context>
chip_gen: v7x
topology: tpu7x:2x2x1
jax: 0.10.0
libtpu: 0.0.40
codegen_flags: <defaults>
</compile_context>

<pallas_src>
import functools

import jax
import jax.numpy as jnp
from jax import lax
from jax.experimental import pallas as pl
from jax.experimental.pallas import tpu as pltpu


def _contrastive_tile_kernel(
    feat_i_ref,   # [T, D] f32   row-block features (resident across inner j)
    feat_j_ref,   # [T, D] f32   col-block features (wrapped column)
    sqn_i_ref,    # [T, 1] f32   row squared norms
    lab_i_ref,    # [T, 1] i32   row labels
    sqn_jT_ref,   # [G, 1, T] f32  all col squared norms, lane-dense, resident
    lab_jT_ref,   # [G, 1, T] i32  all col labels, lane-dense, resident
    out_ref,      # [1, 8, 128] f32 per-row-block partials (pos_sum, neg_sum)
    *, margin, n_valid, tile, grid_g, use_bf16):
    i_idx = pl.program_id(0)
    j_idx = pl.program_id(1)
    # Wrapped (round-robin) column-block index: every step is useful work.
    jc = (i_idx + j_idx) % grid_g

    # Initialize the per-row-block accumulator on the first inner step.
    @pl.when(j_idx == 0)
    def _init():
        out_ref[...] = jnp.zeros_like(out_ref)

    xi = feat_i_ref[...]                           # [T, D] f32
    xj = feat_j_ref[...]                           # [T, D] f32
    if use_bf16:
        # bf16 MXU inputs, f32 accumulation; squared norms stay in f32.
        gram = lax.dot_general(
            xi.astype(jnp.bfloat16), xj.astype(jnp.bfloat16),
            (((1,), (1,)), ((), ())),
            preferred_element_type=jnp.float32)    # [T, T]
    else:
        gram = lax.dot_general(
            xi, xj, (((1,), (1,)), ((), ())),
            preferred_element_type=jnp.float32)    # [T, T], no transpose of xj

    sqn_j = sqn_jT_ref[jc]                         # [1, T] f32 (lane-dense)
    d2 = sqn_i_ref[...] + sqn_j - 2.0 * gram
    dist = jnp.sqrt(jnp.maximum(d2, 0.0))          # EUP; only long-lived [T,T]

    t = xi.shape[0]
    # Global row/col ids generated in-kernel (no rid/cid inputs or DMAs).
    rid = i_idx * tile + lax.broadcasted_iota(jnp.int32, (t, 1), 0)
    cid = jc * tile + lax.broadcasted_iota(jnp.int32, (1, t), 1)
    # valid pair = off-diagonal AND both rows are real (not padding)
    vp = (rid != cid) & (rid < n_valid) & (cid < n_valid)
    eq = lab_i_ref[...] == lab_jT_ref[jc]          # [T, T] bool

    pos_sum_t = jnp.sum(jnp.where(eq & vp, dist, 0.0))
    neg_sum_t = jnp.sum(jnp.where(jnp.logical_not(eq) & vp,
                                  jnp.maximum(margin - dist, 0.0), 0.0))

    # Tile weight under the round-robin decomposition:
    #   j == 0            -> diagonal tile, weight 1
    #   j == g/2 (g even) -> wrap tile is produced twice, weight 1 each time
    #   otherwise         -> transpose tile never produced, weight 2
    w = jnp.where(j_idx == 0, 1.0, 2.0)
    if grid_g % 2 == 0 and grid_g > 1:
        w = jnp.where(j_idx == grid_g // 2, 1.0, w)

    sub = lax.broadcasted_iota(jnp.int32, out_ref.shape, 1)   # (1, 8, 128)
    contrib = (jnp.where(sub == 0, w * pos_sum_t, 0.0)
               + jnp.where(sub == 1, w * neg_sum_t, 0.0))
    out_ref[...] = out_ref[...] + contrib


def _vmem_estimate_bytes(t, d, n_rows):
    """Rough per-kernel VMEM footprint (double-buffered feat tiles + temps)."""
    feat_tiles = 2 * 2 * t * d * 4         # feat_i + feat_j, double-buffered
    row_aux = 2 * 2 * t * 8                # sqn_i + lab_i tiles
    resident_aux = 2 * 2 * n_rows * 8      # [G,1,T] sqn/lab (both buffers)
    temporaries = 6 * t * t * 4            # gram / dist / where results, masks
    out = 2 * 8 * 128 * 4
    return feat_tiles + row_aux + resident_aux + temporaries + out


def contrastive_loss_pallas(features, labels, margin=2.0, tile=None,
                            use_bf16_gram=None):
    """Pallas implementation of FullDatasetContrastiveLoss._compute_contrastive_loss.

    tile=None auto-picks the largest of (512, 256, 128) that fits a ~44 MiB
    VMEM budget (safe on v7x's 64 MiB physical VMEM; plenty on v5e/v6e).
    use_bf16_gram=None enables bf16 MXU inputs automatically when D >= 256.
    """
    n, d = features.shape
    feats = features.astype(jnp.float32)
    labs = labels.reshape(-1).astype(jnp.int32)

    if use_bf16_gram is None:
        use_bf16_gram = d >= 256

    # Tile / padding selection.  Small batches use a single tile rounded to 8.
    n8 = ((n + 7) // 8) * 8
    budget = 44 * 1024 * 1024
    if tile is None:
        for cand in (512, 256, 128):
            tile = cand
            if _vmem_estimate_bytes(cand, d, max(n8, cand)) <= budget:
                break
    t = n8 if n8 <= tile else int(tile)
    n_pad = ((n + t - 1) // t) * t
    g = n_pad // t
    gj = g // 2 + 1                     # wrapped-column inner extent

    if n_pad != n:
        feats_p = jnp.pad(feats, ((0, n_pad - n), (0, 0)))
        labs_p = jnp.pad(labs, (0, n_pad - n))
    else:
        feats_p, labs_p = feats, labs

    # Aux arrays: row-oriented [N_pad,1] (tiled per row-block) and lane-dense
    # [G,1,T] (fully resident, indexed by the wrapped column index in-kernel).
    sqn_col = jnp.sum(feats_p * feats_p, axis=1, keepdims=True)   # [N_pad, 1]
    lab_col = labs_p.reshape(n_pad, 1)                            # [N_pad, 1]
    sqn_rowT = sqn_col.reshape(g, 1, t)                           # [G, 1, T]
    lab_rowT = labs_p.reshape(g, 1, t)                            # [G, 1, T]

    est = _vmem_estimate_bytes(t, d, n_pad)
    vmem_limit = int(max(32 * 1024 * 1024,
                         min(48 * 1024 * 1024, 2 * est),
                         est + est // 4))

    row_map = lambda i, j: (i, 0)               # resident across inner j
    col_map = lambda i, j: ((i + j) % g, 0)     # wrapped column block
    res_map = lambda i, j: (0, 0, 0)            # fully resident aux

    kernel = functools.partial(
        _contrastive_tile_kernel,
        margin=float(margin), n_valid=int(n), tile=int(t), grid_g=int(g),
        use_bf16=bool(use_bf16_gram))

    out = pl.pallas_call(
        kernel,
        out_shape=jax.ShapeDtypeStruct((g, 8, 128), jnp.float32),
        grid=(g, gj),
        in_specs=[
            pl.BlockSpec((t, d), row_map),      # feat_i
            pl.BlockSpec((t, d), col_map),      # feat_j
            pl.BlockSpec((t, 1), row_map),      # sqn_i
            pl.BlockSpec((t, 1), row_map),      # lab_i
            pl.BlockSpec((g, 1, t), res_map),   # sqn_jT (resident)
            pl.BlockSpec((g, 1, t), res_map),   # lab_jT (resident)
        ],
        out_specs=pl.BlockSpec((1, 8, 128), lambda i, j: (i, 0, 0)),
        compiler_params=pltpu.CompilerParams(
            dimension_semantics=("parallel", "arbitrary"),
            vmem_limit_bytes=vmem_limit,
        ),
    )(feats_p, feats_p, sqn_col, lab_col, sqn_rowT, lab_rowT)

    # Tiny epilogue: combine per-row-block partials; counts are exact ints
    # computed from labels alone (no in-kernel count reduction needed).
    pos_sum = jnp.sum(out[:, 0, 0])
    neg_sum = jnp.sum(out[:, 1, 0])
    eq_full = (labs[:, None] == labs[None, :]).astype(jnp.int32)
    pos_cnt = jnp.sum(eq_full) - n
    neg_cnt = n * (n - 1) - pos_cnt

    pos_loss = pos_sum / jnp.maximum(pos_cnt.astype(jnp.float32), 1.0)
    neg_loss = neg_sum / jnp.maximum(neg_cnt.astype(jnp.float32), 1.0)
    total = jnp.where((pos_cnt > 0) & (neg_cnt > 0), pos_loss + neg_loss, 0.0)
    return total


class FullDatasetContrastiveLoss:
    """JAX/Pallas port of the PyTorch module's forward pass."""

    def __init__(self, margin=2.0, update_frequency=3, max_global_samples=5000):
        self.margin = margin
        self.update_frequency = update_frequency
        self.max_global_samples = max_global_samples
        self.global_features = None
        self.global_labels = None
        self.batch_count = 0

    def __call__(self, features, labels):
        self.batch_count += 1
        if self.global_features is None:
            return contrastive_loss_pallas(features, labels, self.margin)
        # Glue path: concat batch with global context, run the same kernel.
        # TODO(synk): PyTorch uses torch.randperm to subsample 1500 global rows;
        # here we deterministically take the first min(1500, G) rows.
        g = self.global_features.shape[0]
        k = min(g, 1500)
        all_features = jnp.concatenate([features, self.global_features[:k]], axis=0)
        all_labels = jnp.concatenate([labels, self.global_labels[:k]], axis=0)
        return contrastive_loss_pallas(all_features, all_labels, self.margin)


def _reference_loss(features, labels, margin=2.0):
    """Pure-JAX reference mirroring the PyTorch semantics (for verification)."""
    n = features.shape[0]
    diff = features[:, None, :] - features[None, :, :]
    dist = jnp.sqrt(jnp.maximum(jnp.sum(diff * diff, axis=-1), 0.0))
    eq = (labels[:, None] == labels[None, :]).astype(jnp.float32)
    off_diag = 1.0 - jnp.eye(n, dtype=jnp.float32)
    pos_mask = eq * off_diag
    neg_mask = (1.0 - eq) * off_diag
    pos_count = jnp.sum(pos_mask)
    neg_count = jnp.sum(neg_mask)
    pos_loss = jnp.sum(dist * pos_mask) / jnp.maximum(pos_count, 1.0)
    neg_loss = jnp.sum(jnp.maximum(margin - dist, 0.0) * neg_mask) / jnp.maximum(
        neg_count, 1.0)
    total = pos_loss + neg_loss
    return jnp.where((pos_count > 0) & (neg_count > 0), total, 0.0)


if __name__ == "__main__":
    key = jax.random.PRNGKey(0)
    k1, k2, k3, k4, k5, k6, k7, k8 = jax.random.split(key, 8)

    # Test 1: small batch (single tile + padding), via the module wrapper.
    N1, D1 = 12, 32
    feats1 = jax.random.normal(k1, (N1, D1), dtype=jnp.float32)
    labs1 = jax.random.randint(k2, (N1,), 0, 3).astype(jnp.int32)
    loss_mod = FullDatasetContrastiveLoss(margin=2.0)
    loss1 = jax.block_until_ready(loss_mod(feats1, labs1))
    ref1 = _reference_loss(feats1, labs1, margin=2.0)
    assert jnp.allclose(loss1, ref1, rtol=1e-4, atol=1e-4), (loss1, ref1)

    # Test 2: odd grid (g=3) round-robin, padding 300 -> 384.
    N2, D2 = 300, 32
    feats2 = jax.random.normal(k3, (N2, D2), dtype=jnp.float32)
    labs2 = jax.random.randint(k4, (N2,), 0, 3).astype(jnp.int32)
    loss2 = jax.block_until_ready(
        contrastive_loss_pallas(feats2, labs2, margin=2.0, tile=128))
    ref2 = _reference_loss(feats2, labs2, margin=2.0)
    assert jnp.allclose(loss2, ref2, rtol=1e-3, atol=1e-3), (loss2, ref2)

    # Test 3: even grid (g=4) round-robin -> exercises the double-produced
    # wrap tile (weight-1) path, padding 500 -> 512.
    N3, D3 = 500, 32
    feats3 = jax.random.normal(k5, (N3, D3), dtype=jnp.float32)
    labs3 = jax.random.randint(k6, (N3,), 0, 4).astype(jnp.int32)
    loss3 = jax.block_until_ready(
        contrastive_loss_pallas(feats3, labs3, margin=2.0, tile=128))
    ref3 = _reference_loss(feats3, labs3, margin=2.0)
    assert jnp.allclose(loss3, ref3, rtol=1e-3, atol=1e-3), (loss3, ref3)

    # Test 4: bf16-gram path (large D), scaled so distances straddle the margin.
    N4, D4 = 200, 256
    feats4 = 0.08 * jax.random.normal(k7, (N4, D4), dtype=jnp.float32)
    labs4 = jax.random.randint(k8, (N4,), 0, 3).astype(jnp.int32)
    loss4 = jax.block_until_ready(
        contrastive_loss_pallas(feats4, labs4, margin=2.0, tile=128,
                                use_bf16_gram=True))
    ref4 = _reference_loss(feats4, labs4, margin=2.0)
    assert jnp.allclose(loss4, ref4, rtol=1e-2, atol=1e-2), (loss4, ref4)

    print("KERNEL_OK")
</pallas_src>

<mosaic_0001>
module attributes {stable_mosaic.version = 11 : i64} {
  func.func @_contrastive_tile_kernel(%arg0: i32, %arg1: i32, %arg2: memref<16x32xf32, #tpu.memory_space<vmem>>, %arg3: memref<16x32xf32, #tpu.memory_space<vmem>>, %arg4: memref<16x1xf32, #tpu.memory_space<vmem>>, %arg5: memref<16x1xi32, #tpu.memory_space<vmem>>, %arg6: memref<1x1x16xf32, #tpu.memory_space<vmem>>, %arg7: memref<1x1x16xi32, #tpu.memory_space<vmem>>, %arg8: memref<1x8x128xf32, #tpu.memory_space<vmem>>) attributes {dimension_semantics = [#tpu.dimension_semantics<parallel>, #tpu.dimension_semantics<arbitrary>], iteration_bounds = array<i64: 1, 1>, scalar_prefetch = 0 : i64, scratch_operands = 0 : i64, tpu.core_type = #tpu.core_type<tc>, window_params = [{transform_indices = @transform_0, window_bounds = array<i64: 16, 32>}, {transform_indices = @transform_1, window_bounds = array<i64: 16, 32>}, {transform_indices = @transform_2, window_bounds = array<i64: 16, 1>}, {transform_indices = @transform_3, window_bounds = array<i64: 16, 1>}, {pipeline_mode = #tpu.pipeline_mode<synchronous>, transform_indices = @transform_4, window_bounds = array<i64: 1, 1, 16>}, {pipeline_mode = #tpu.pipeline_mode<synchronous>, transform_indices = @transform_5, window_bounds = array<i64: 1, 1, 16>}, {transform_indices = @transform_6, window_bounds = array<i64: 1, 8, 128>}]} {
    %0 = arith.addi %arg0, %arg1 : i32
    %c1_i32 = arith.constant 1 : i32
    %c0_i32 = arith.constant 0 : i32
    %1 = arith.cmpi eq, %c1_i32, %c0_i32 : i32
    %c1_i32_0 = arith.constant 1 : i32
    %2 = arith.select %1, %c1_i32_0, %c1_i32 : i32
    %3 = arith.remsi %0, %2 : i32
    %c0_i32_1 = arith.constant 0 : i32
    %4 = arith.cmpi ne, %3, %c0_i32_1 : i32
    %c0_i32_2 = arith.constant 0 : i32
    %5 = arith.cmpi slt, %3, %c0_i32_2 : i32
    %c0_i32_3 = arith.constant 0 : i32
    %6 = arith.cmpi slt, %2, %c0_i32_3 : i32
    %7 = arith.xori %5, %6 : i1
    %8 = arith.andi %7, %4 : i1
    %9 = arith.addi %3, %2 : i32
    %10 = arith.select %8, %9, %3 : i32
    %c0_i32_4 = arith.constant 0 : i32
    %11 = arith.cmpi eq, %arg1, %c0_i32_4 : i32
    %12 = arith.extui %11 : i1 to i32
    %c0_i32_5 = arith.constant 0 : i32
    %13 = arith.cmpi ne, %12, %c0_i32_5 : i32
    scf.if %13 {
      %cst_41 = arith.constant 0.000000e+00 : f32
      %94 = vector.broadcast %cst_41 : f32 to vector<1x8x128xf32>
      %c0_42 = arith.constant 0 : index
      %c0_43 = arith.constant 0 : index
      %c0_44 = arith.constant 0 : index
      %95 = vector.load %arg8[%c0_42, %c0_43, %c0_44] : memref<1x8x128xf32, #tpu.memory_space<vmem>>, vector<1x8x128xf32>
      tpu.vector_store %arg8[%c0_42, %c0_43, %c0_44], %94 {strides = array<i32>} : memref<1x8x128xf32, #tpu.memory_space<vmem>>, vector<1x8x128xf32>,
    } else {
    }
    %c0 = arith.constant 0 : index
    %c0_6 = arith.constant 0 : index
    %14 = vector.load %arg2[%c0, %c0_6] : memref<16x32xf32, #tpu.memory_space<vmem>>, vector<16x32xf32>
    %c0_7 = arith.constant 0 : index
    %c0_8 = arith.constant 0 : index
    %15 = vector.load %arg3[%c0_7, %c0_8] : memref<16x32xf32, #tpu.memory_space<vmem>>, vector<16x32xf32>
    %cst = arith.constant dense<0.000000e+00> : vector<16x16xf32>
    %16 = tpu.matmul %14, %15, %cst {dimension_numbers = #tpu.dot_dimension_numbers<[1], [1], [0], [0], [0, 0, 1, 0], [], []>} : vector<16x32xf32>, vector<16x32xf32>, vector<16x16xf32> -> vector<16x16xf32>
    %17 = arith.index_cast %10 : i32 to index
    %c0_9 = arith.constant 0 : index
    %c0_10 = arith.constant 0 : index
    %18 = vector.load %arg6[%17, %c0_9, %c0_10] : memref<1x1x16xf32, #tpu.memory_space<vmem>>, vector<1x1x16xf32>
    %19 = vector.shape_cast %18 : vector<1x1x16xf32> to vector<1x16xf32>
    %c0_11 = arith.constant 0 : index
    %c0_12 = arith.constant 0 : index
    %20 = vector.load %arg4[%c0_11, %c0_12] : memref<16x1xf32, #tpu.memory_space<vmem>>, vector<16x1xf32>
    %21 = vector.broadcast %20 : vector<16x1xf32> to vector<16x16xf32>
    %22 = vector.broadcast %19 : vector<1x16xf32> to vector<16x16xf32>
    %23 = arith.addf %21, %22 : vector<16x16xf32>
    %cst_13 = arith.constant 2.000000e+00 : f32
    %24 = vector.broadcast %cst_13 : f32 to vector<16x16xf32>
    %25 = arith.mulf %24, %16 : vector<16x16xf32>
    %26 = arith.subf %23, %25 : vector<16x16xf32>
    %cst_14 = arith.constant 0.000000e+00 : f32
    %27 = vector.broadcast %cst_14 : f32 to vector<16x16xf32>
    %28 = arith.maximumf %26, %27 : vector<16x16xf32>
    %29 = math.sqrt %28 : vector<16x16xf32>
    %c16_i32 = arith.constant 16 : i32
    %30 = arith.muli %arg0, %c16_i32 : i32
    %31 = tpu.iota {dimensions = array<i32: 0>} : vector<16x1xi32>
    %32 = vector.broadcast %30 : i32 to vector<16x1xi32>
    %33 = arith.addi %32, %31 : vector<16x1xi32>
    %c16_i32_15 = arith.constant 16 : i32
    %34 = arith.muli %10, %c16_i32_15 : i32
    %35 = tpu.iota {dimensions = array<i32: 1>} : vector<1x16xi32>
    %36 = vector.broadcast %34 : i32 to vector<1x16xi32>
    %37 = arith.addi %36, %35 : vector<1x16xi32>
    %38 = vector.broadcast %33 : vector<16x1xi32> to vector<16x16xi32>
    %39 = vector.broadcast %37 : vector<1x16xi32> to vector<16x16xi32>
    %40 = arith.cmpi ne, %38, %39 : vector<16x16xi32>
    %c12_i32 = arith.constant 12 : i32
    %41 = vector.broadcast %c12_i32 : i32 to vector<16x1xi32>
    %42 = arith.cmpi slt, %33, %41 : vector<16x1xi32>
    %43 = vector.broadcast %42 : vector<16x1xi1> to vector<16x16xi1>
    %44 = arith.andi %40, %43 : vector<16x16xi1>
    %c12_i32_16 = arith.constant 12 : i32
    %45 = vector.broadcast %c12_i32_16 : i32 to vector<1x16xi32>
    %46 = arith.cmpi slt, %37, %45 : vector<1x16xi32>
    %47 = vector.broadcast %46 : vector<1x16xi1> to vector<16x16xi1>
    %48 = arith.andi %44, %47 : vector<16x16xi1>
    %c0_17 = arith.constant 0 : index
    %c0_18 = arith.constant 0 : index
    %49 = vector.load %arg5[%c0_17, %c0_18] : memref<16x1xi32, #tpu.memory_space<vmem>>, vector<16x1xi32>
    %50 = arith.index_cast %10 : i32 to index
    %c0_19 = arith.constant 0 : index
    %c0_20 = arith.constant 0 : index
    %51 = vector.load %arg7[%50, %c0_19, %c0_20] : memref<1x1x16xi32, #tpu.memory_space<vmem>>, vector<1x1x16xi32>
    %52 = vector.shape_cast %51 : vector<1x1x16xi32> to vector<1x16xi32>
    %53 = vector.broadcast %49 : vector<16x1xi32> to vector<16x16xi32>
    %54 = vector.broadcast %52 : vector<1x16xi32> to vector<16x16xi32>
    %55 = arith.cmpi eq, %53, %54 : vector<16x16xi32>
    %56 = arith.andi %55, %48 : vector<16x16xi1>
    %cst_21 = arith.constant 0.000000e+00 : f32
    %57 = vector.broadcast %cst_21 : f32 to vector<16x16xf32>
    %58 = arith.select %56, %29, %57 : vector<16x16xi1>, vector<16x16xf32>
    %59 = vector.shape_cast %58 : vector<16x16xf32> to vector<1x16x16xf32>
    %cst_22 = arith.constant dense<0.000000e+00> : vector<1xf32>
    %60 = vector.multi_reduction <add>, %59, %cst_22 [1, 2] : vector<1x16x16xf32> to vector<1xf32>
    %61 = vector.shape_cast %60 : vector<1xf32> to vector<1x1x1xf32>
    %62 = vector.extract %61[0, 0, 0] : f32 from vector<1x1x1xf32>
    %cst_23 = arith.constant dense<true> : vector<16x16xi1>
    %63 = arith.xori %55, %cst_23 : vector<16x16xi1>
    %64 = arith.andi %63, %48 : vector<16x16xi1>
    %cst_24 = arith.constant 2.000000e+00 : f32
    %65 = vector.broadcast %cst_24 : f32 to vector<16x16xf32>
    %66 = arith.subf %65, %29 : vector<16x16xf32>
    %cst_25 = arith.constant 0.000000e+00 : f32
    %67 = vector.broadcast %cst_25 : f32 to vector<16x16xf32>
    %68 = arith.maximumf %66, %67 : vector<16x16xf32>
    %cst_26 = arith.constant 0.000000e+00 : f32
    %69 = vector.broadcast %cst_26 : f32 to vector<16x16xf32>
    %70 = arith.select %64, %68, %69 : vector<16x16xi1>, vector<16x16xf32>
    %71 = vector.shape_cast %70 : vector<16x16xf32> to vector<1x16x16xf32>
    %cst_27 = arith.constant dense<0.000000e+00> : vector<1xf32>
    %72 = vector.multi_reduction <add>, %71, %cst_27 [1, 2] : vector<1x16x16xf32> to vector<1xf32>
    %73 = vector.shape_cast %72 : vector<1xf32> to vector<1x1x1xf32>
    %74 = vector.extract %73[0, 0, 0] : f32 from vector<1x1x1xf32>
    %c0_i32_28 = arith.constant 0 : i32
    %75 = arith.cmpi eq, %arg1, %c0_i32_28 : i32
    %cst_29 = arith.constant 1.000000e+00 : f32
    %cst_30 = arith.constant 2.000000e+00 : f32
    %76 = arith.select %75, %cst_29, %cst_30 : f32
    %77 = tpu.iota {dimensions = array<i32: 1>} : vector<1x8x128xi32>
    %c0_i32_31 = arith.constant 0 : i32
    %78 = vector.broadcast %c0_i32_31 : i32 to vector<1x8x128xi32>
    %79 = arith.cmpi eq, %77, %78 : vector<1x8x128xi32>
    %80 = arith.mulf %76, %62 : f32
    %cst_32 = arith.constant 0.000000e+00 : f32
    %81 = vector.broadcast %80 : f32 to vector<1x8x128xf32>
    %82 = vector.broadcast %cst_32 : f32 to vector<1x8x128xf32>
    %83 = arith.select %79, %81, %82 : vector<1x8x128xi1>, vector<1x8x128xf32>
    %c1_i32_33 = arith.constant 1 : i32
    %84 = vector.broadcast %c1_i32_33 : i32 to vector<1x8x128xi32>
    %85 = arith.cmpi eq, %77, %84 : vector<1x8x128xi32>
    %86 = arith.mulf %76, %74 : f32
    %cst_34 = arith.constant 0.000000e+00 : f32
    %87 = vector.broadcast %86 : f32 to vector<1x8x128xf32>
    %88 = vector.broadcast %cst_34 : f32 to vector<1x8x128xf32>
    %89 = arith.select %85, %87, %88 : vector<1x8x128xi1>, vector<1x8x128xf32>
    %90 = arith.addf %83, %89 : vector<1x8x128xf32>
    %c0_35 = arith.constant 0 : index
    %c0_36 = arith.constant 0 : index
    %c0_37 = arith.constant 0 : index
    %91 = vector.load %arg8[%c0_35, %c0_36, %c0_37] : memref<1x8x128xf32, #tpu.memory_space<vmem>>, vector<1x8x128xf32>
    %92 = arith.addf %91, %90 : vector<1x8x128xf32>
    %c0_38 = arith.constant 0 : index
    %c0_39 = arith.constant 0 : index
    %c0_40 = arith.constant 0 : index
    %93 = vector.load %arg8[%c0_38, %c0_39, %c0_40] : memref<1x8x128xf32, #tpu.memory_space<vmem>>, vector<1x8x128xf32>
    tpu.vector_store %arg8[%c0_38, %c0_39, %c0_40], %92 {strides = array<i32>} : memref<1x8x128xf32, #tpu.memory_space<vmem>>, vector<1x8x128xf32>,
    return
  }
  func.func @transform_0(%arg0: i32, %arg1: i32) -> (i32, i32) {
    %c0_i32 = arith.constant 0 : i32
    %c0_i32_0 = arith.constant 0 : i32
    return %arg0, %c0_i32 : i32, i32
  }
  func.func @transform_1(%arg0: i32, %arg1: i32) -> (i32, i32) {
    %0 = arith.addi %arg0, %arg1 : i32
    %c1_i32 = arith.constant 1 : i32
    %c0_i32 = arith.constant 0 : i32
    %1 = arith.cmpi eq, %c1_i32, %c0_i32 : i32
    %c1_i32_0 = arith.constant 1 : i32
    %2 = arith.select %1, %c1_i32_0, %c1_i32 : i32
    %3 = arith.remsi %0, %2 : i32
    %c0_i32_1 = arith.constant 0 : i32
    %4 = arith.cmpi ne, %3, %c0_i32_1 : i32
    %c0_i32_2 = arith.constant 0 : i32
    %5 = arith.cmpi slt, %3, %c0_i32_2 : i32
    %c0_i32_3 = arith.constant 0 : i32
    %6 = arith.cmpi slt, %2, %c0_i32_3 : i32
    %7 = arith.xori %5, %6 : i1
    %8 = arith.andi %7, %4 : i1
    %9 = arith.addi %3, %2 : i32
    %10 = arith.select %8, %9, %3 : i32
    %c0_i32_4 = arith.constant 0 : i32
    %c0_i32_5 = arith.constant 0 : i32
    return %10, %c0_i32_4 : i32, i32
  }
  func.func @transform_2(%arg0: i32, %arg1: i32) -> (i32, i32) {
    %c0_i32 = arith.constant 0 : i32
    %c0_i32_0 = arith.constant 0 : i32
    return %arg0, %c0_i32 : i32, i32
  }
  func.func @transform_3(%arg0: i32, %arg1: i32) -> (i32, i32) {
    %c0_i32 = arith.constant 0 : i32
    %c0_i32_0 = arith.constant 0 : i32
    return %arg0, %c0_i32 : i32, i32
  }
  func.func @transform_4(%arg0: i32, %arg1: i32) -> (i32, i32, i32) {
    %c0_i32 = arith.constant 0 : i32
    %c0_i32_0 = arith.constant 0 : i32
    %c0_i32_1 = arith.constant 0 : i32
    %c0_i32_2 = arith.constant 0 : i32
    return %c0_i32, %c0_i32_0, %c0_i32_1 : i32, i32, i32
  }
  func.func @transform_5(%arg0: i32, %arg1: i32) -> (i32, i32, i32) {
    %c0_i32 = arith.constant 0 : i32
    %c0_i32_0 = arith.constant 0 : i32
    %c0_i32_1 = arith.constant 0 : i32
    %c0_i32_2 = arith.constant 0 : i32
    return %c0_i32, %c0_i32_0, %c0_i32_1 : i32, i32, i32
  }
  func.func @transform_6(%arg0: i32, %arg1: i32) -> (i32, i32, i32) {
    %c0_i32 = arith.constant 0 : i32
    %c0_i32_0 = arith.constant 0 : i32
    %c0_i32_1 = arith.constant 0 : i32
    return %arg0, %c0_i32, %c0_i32_0 : i32, i32, i32
  }
}

</mosaic_0001>

<llo_original>
// kernel: tpu_custom_call.1
$region0: #{tpu_custom_call.1}
  #allocation0 [shape = 'u32[]', space=smem, size = 0x4, offset = 0x4, fixed_abs, tag = 'smem constant byte address 0x4 - core index']
  #allocation1 [shape = 'u32[144,128]{1,0:T(1,128)}', space=vmem, size = 0x12000, scoped, tag = 'internal scratch']
  %s0 = inlined_call_operand.vmem [shape: f32[16,32], index: 0, kind: input, shape index: {}]
  %s1 = inlined_call_operand.vmem [shape: f32[16,32], index: 1, kind: input, shape index: {}]
  %s2 = inlined_call_operand.vmem [shape: f32[16,1], index: 2, kind: input, shape index: {}]
  %s3 = inlined_call_operand.vmem [shape: s32[16,1], index: 3, kind: input, shape index: {}]
  %s4 = inlined_call_operand.vmem [shape: f32[1,1,16], index: 4, kind: input, shape index: {}]
  %s5 = inlined_call_operand.vmem [shape: s32[1,1,16], index: 5, kind: input, shape index: {}]
  %s6 = inlined_call_operand.hbm [shape: f32[1,8,128], index: 6, kind: output, shape index: {}]
  %s7 = sld [smem:[#allocation0]]
  $region38: #{tpu_custom_call.1} parent=0
    _
  %s9 = ssub.s32 1, %s7
  %s10 = scalar_select 0, %s9, %s7
  $region1: #{tpu_custom_call.1} parent=0
    #allocation2 [shape = 'u8[4096]{0}', space=vmem, size = 0x1000, scoped, tag = 'output window, operand 0, single buffered']
    #allocation3 [shape = 's32[1]{0}', space=sflag, size = 0x4, scoped, tag = 'scoped memory for tpu_custom_call.1']
    %11 = vsyncpa [#allocation3], 0
    // Predicated region
    $region2: #{tpu_custom_call.1} parent=1 // pred_check
      _
    $region3: #{tpu_custom_call.1} parent=1 // pred_check_branch
      %13 = sbr.rel (0) target = $region5
    $region4: #{tpu_custom_call.1} parent=1 // pred_region
      _
    $region5: #{tpu_custom_call.1} parent=1 // pred_fallthru
      _
    // Predicated region
    $region6: #{tpu_custom_call.1} parent=1 // pred_check
      _
    $region7: #{tpu_custom_call.1} parent=1 // pred_check_branch
      %15 = sbr.rel (0) target = $region9
    $region8: #{tpu_custom_call.1} parent=1 // pred_region
      _
    $region9: #{tpu_custom_call.1} parent=1 // pred_fallthru
      _
    // Predicated region
    $region10: #{tpu_custom_call.1} parent=1 // pred_check
      _
    $region11: #{tpu_custom_call.1} parent=1 // pred_check_branch
      %17 = sbr.rel (0) target = $region13
    $region12: #{tpu_custom_call.1} parent=1 // pred_region
      _
    $region13: #{tpu_custom_call.1} parent=1 // pred_fallthru
      _
    // Predicated region
    $region14: #{tpu_custom_call.1} parent=1 // pred_check
      _
    $region15: #{tpu_custom_call.1} parent=1 // pred_check_branch
      %19 = sbr.rel (0) target = $region17
    $region16: #{tpu_custom_call.1} parent=1 // pred_region
      _
    $region17: #{tpu_custom_call.1} parent=1 // pred_fallthru
      _
    // Predicated region
    $region18: #{tpu_custom_call.1} parent=1 // pred_check
      _
    $region19: #{tpu_custom_call.1} parent=1 // pred_check_branch
      %21 = sbr.rel (0) target = $region21
    $region20: #{tpu_custom_call.1} parent=1 // pred_region
      _
    $region21: #{tpu_custom_call.1} parent=1 // pred_fallthru
      _
    // Predicated region
    $region22: #{tpu_custom_call.1} parent=1 // pred_check
      _
    $region23: #{tpu_custom_call.1} parent=1 // pred_check_branch
      %23 = sbr.rel (0) target = $region25
    $region24: #{tpu_custom_call.1} parent=1 // pred_region
      _
    $region25: #{tpu_custom_call.1} parent=1 // pred_fallthru
      _
    %p24 = scmp.eq.s32.totalorder 0, 0
    // Predicated region
    $region26: #{tpu_custom_call.1} parent=1 // pred_check
      %p25 = pneg %p24
    $region27: #{tpu_custom_call.1} parent=1 // pred_check_branch
      %27 = sbr.rel (%p25) target = $region29
    $region28: #{tpu_custom_call.1} parent=1 // pred_region
      %28 = vst [vmem:[#allocation2] sm:$0xff] 0.0
    $region29: #{tpu_custom_call.1} parent=1 // pred_fallthru
      _
    %v29 = vld [vmem:[%s0] sm:$0xff]
    %v30 = vld [vmem:[%s0 + $0x8] sm:$0xff]
    %v31 = vld [vmem:[%s1] sm:$0xff]
    %v32 = vld [vmem:[%s1 + $0x8] sm:$0xff]
    %vm33 = vcmask 261120
    %v35 = vsel %vm33, %v29, 0
    %v38 = vsel %vm33, %v30, 0
    %v41 = vsel %vm33, %v31, 0
    %v44 = vsel %vm33, %v32, 0
    %46 = vmatprep.subr.mxu0 0.0
    %47 = vmatpush1.xpose.msra.mxu0 %v41
    %48 = vmatprep.subr.mxu0 0.0
    %49 = vmatpush1.xpose.msra.mxu0 %v44
    %50 = vmatprep.subr.mxu0 0.0
    %51 = vmatpush1.xpose.msra.mxu0 0.0
    %52 = vmatprep.subr.mxu0 0.0
    %53 = vmatpush1.xpose.msra.mxu0 0.0
    %54 = vmatprep.subr.mxu0 0.0
    %55 = vmatpush1.xpose.msra.mxu0 0.0
    %56 = vmatprep.subr.mxu0 0.0
    %57 = vmatpush1.xpose.msra.mxu0 0.0
    %58 = vmatprep.subr.mxu0 0.0
    %59 = vmatpush1.xpose.msra.mxu0 0.0
    %60 = vmatprep.subr.mxu0 0.0
    %61 = vmatpush1.xpose.msra.mxu0 0.0
    %62 = vmatprep.subr.mxu0 0.0
    %63 = vmatpush1.xpose.msra.mxu0 0.0
    %64 = vmatprep.subr.mxu0 0.0
    %65 = vmatpush1.xpose.msra.mxu0 0.0
    %66 = vmatprep.subr.mxu0 0.0
    %67 = vmatpush1.xpose.msra.mxu0 0.0
    %68 = vmatprep.subr.mxu0 0.0
    %69 = vmatpush1.xpose.msra.mxu0 0.0
    %70 = vmatprep.subr.mxu0 0.0
    %71 = vmatpush1.xpose.msra.mxu0 0.0
    %72 = vmatprep.subr.mxu0 0.0
    %73 = vmatpush1.xpose.msra.mxu0 0.0
    %74 = vmatprep.subr.mxu0 0.0
    %75 = vmatpush1.xpose.msra.mxu0 0.0
    %76 = vmatprep.subr.mxu0 0.0
    %77 = vmatpush1.xpose.msra.mxu0 0.0
    %78 = vmatprep.subr.mxu0 0.0
    %79 = vmatpush1.xpose.msra.mxu0 0.0
    %80 = vmatprep.subr.mxu0 0.0
    %81 = vmatpush1.xpose.msra.mxu0 0.0
    %82 = vmatprep.subr.mxu0 0.0
    %83 = vmatpush1.xpose.msra.mxu0 0.0
    %84 = vmatprep.subr.mxu0 0.0
    %85 = vmatpush1.xpose.msra.mxu0 0.0
    %86 = vmatprep.subr.mxu0 0.0
    %87 = vmatpush1.xpose.msra.mxu0 0.0
    %88 = vmatprep.subr.mxu0 0.0
    %89 = vmatpush1.xpose.msra.mxu0 0.0
    %90 = vmatprep.subr.mxu0 0.0
    %91 = vmatpush1.xpose.msra.mxu0 0.0
    %92 = vmatprep.subr.mxu0 0.0
    %93 = vmatpush1.xpose.msra.mxu0 0.0
    %94 = vmatprep.subr.mxu0 0.0
    %95 = vmatpush1.xpose.msra.mxu0 0.0
    %96 = vmatprep.subr.mxu0 0.0
    %97 = vmatpush1.xpose.msra.mxu0 0.0
    %98 = vmatprep.subr.mxu0 0.0
    %99 = vmatpush1.xpose.msra.mxu0 0.0
    %100 = vmatprep.subr.mxu0 0.0
    %101 = vmatpush1.xpose.msra.mxu0 0.0
    %102 = vmatprep.subr.mxu0 0.0
    %103 = vmatpush1.xpose.msra.mxu0 0.0
    %104 = vmatprep.subr.mxu0 0.0
    %105 = vmatpush1.xpose.msra.mxu0 0.0
    %106 = vmatprep.subr.mxu0 0.0
    %107 = vmatpush1.xpose.msra.mxu0 0.0
    %108 = vmatprep.subr.mxu0 0.0
    %109 = vmatpush1.xpose.msra.mxu0 0.0
    %110 = vmatprep.mubr.f32.mxu0 0.0
    %111 = vmatmul.mubr.f32.gmra.mrb[0].mxu0 %v35
    %v112 = vpop.f32.mrb[0].mxu0
    %v113 = vadd.f32 0.0, %v112
    %v114 = vpop.f32.mrb[0].mxu0
    %115 = vmatprep.mubr.f32.mxu0 0.0
    %116 = vmatmul.mubr.f32.gmra.mrb[0].mxu0 %v38
    %v117 = vpop.f32.mrb[0].mxu0
    %v118 = vadd.f32 0.0, %v117
    %v119 = vpop.f32.mrb[0].mxu0
    %120 = vdwg.mxu0
    %v121 = vld [vmem:[%s4] sm:$0x1]
    %v122 = vld [vmem:[%s2] sm:$0xff]
    %v123 = vld [vmem:[%s2 + $0x8] sm:$0xff]
    %125 = vset.pattern.permute.xlu0 0
    %126 = vperm.xlu0 %125, %v122
    %v127 = vpop.permute.xlu0 %126
    %130 = vset.pattern.permute.xlu0 0
    %131 = vperm.xlu0 %130, %v123
    %v132 = vpop.permute.xlu0 %131
    %v135 = vlaneseq
    %v136 = vshrl.u32 %v135, 7
    %v137 = vsub.s32 0, %v136
    %v138 = vrot.slane %v121, %v137
    %v140 = vadd.f32 %v127, %v138
    %v141 = vadd.f32 %v132, %v138
    %v142 = vmul.f32 %v113, 2.0
    %v143 = vmul.f32 %v118, 2.0
    %v144 = vsub.f32 %v140, %v142
    %v145 = vsub.f32 %v141, %v143
    %v146 = vmax.f32 %v144, 0.0
    %v147 = vmax.f32 %v145, 0.0
    %v148 = vrsqrt.pop %v146
    %v149 = vmul.f32 %v146, %v148
    %vm150 = vcmp.eq.f32.partialorder %v146, inf
    %v151 = vsel %vm150, %v146, %v149
    %vm152 = vcmp.eq.f32.partialorder %v146, 0.0
    %v153 = vand.u32 %v146, 2147483648
    %v154 = vsel %vm152, %v153, %v151
    %v155 = vrsqrt.pop %v147
    %v156 = vmul.f32 %v147, %v155
    %vm157 = vcmp.eq.f32.partialorder %v147, inf
    %v158 = vsel %vm157, %v147, %v156
    %vm159 = vcmp.eq.f32.partialorder %v147, 0.0
    %v160 = vand.u32 %v147, 2147483648
    %v161 = vsel %vm159, %v160, %v158
    %s162 = smul.u32 0, 16
    %v163 = vlaneseq
    %v164 = vshrl.u32 %v163, 7
    %v165 = vadd.s32 %v164, 8
    %v166 = vstv %s162
    %v167 = vadd.s32 %v166, %v164
    %v168 = vadd.s32 %v166, %v165
    %v169 = vlaneseq
    %v170 = vand.u32 %v169, 127
    %vm171 = vcmp.ne.s32.totalorder %v167, %v170
    %vm172 = vcmp.ne.s32.totalorder %v168, %v170
    %vm173 = vcmp.lt.s32.totalorder %v167, 12
    %vm174 = vcmp.lt.s32.totalorder %v168, 12
    %v175 = vsel %vm173, 1, 0
    %v176 = vsel %vm174, 1, 0
    %vm177 = vcmp.eq.s32.totalorder %v175, 1
    %vm178 = vcmp.eq.s32.totalorder %v176, 1
    %vm179 = vmand %vm171, %vm177
    %vm180 = vmand %vm172, %vm178
    %vm181 = vcmp.lt.s32.totalorder %v170, 12
    %v182 = vsel %vm181, 1, 0
    %vm183 = vcmp.eq.s32.totalorder %v182, 1
    %vm184 = vmand %vm179, %vm183
    %vm185 = vmand %vm180, %vm183
    %v186 = vld [vmem:[%s3] sm:$0xff]
    %v187 = vld [vmem:[%s3 + $0x8] sm:$0xff]
    %v188 = vld [vmem:[%s5] sm:$0x1]
    %189 = vset.pattern.permute.xlu0 0
    %190 = vperm.xlu0 %189, %v186
    %v191 = vpop.permute.xlu0 %190
    %192 = vset.pattern.permute.xlu0 0
    %193 = vperm.xlu0 %192, %v187
    %v194 = vpop.permute.xlu0 %193
    %v195 = vlaneseq
    %v196 = vshrl.u32 %v195, 7
    %v197 = vsub.s32 0, %v196
    %v198 = vrot.slane %v188, %v197
    %vm199 = vcmp.eq.s32.totalorder %v191, %v198
    %vm200 = vcmp.eq.s32.totalorder %v194, %v198
    %vm201 = vmand %vm199, %vm184
    %vm202 = vmand %vm200, %vm185
    %v203 = vsel %vm201, %v154, 0.0
    %v204 = vsel %vm202, %v161, 0.0
    %vm205 = vcmask 130048
    %v206 = vsel %vm205, %v203, 0.0
    %v207 = vsel %vm205, %v204, 0.0
    %v208 = vadd.f32 %v206, %v207
    %209 = vadd.xlane.f32.xlu0 %v208
    %v210 = vpop.xlane.xlu0 %209
    %v211 = vrot.slane %v210, 4
    %v212 = vadd.f32 %v210, %v211
    %v213 = vrot.slane %v212, 2
    %v214 = vadd.f32 %v212, %v213
    %v215 = vrot.slane %v214, 1
    %v216 = vadd.f32 %v214, %v215
    %s217 = vtos %v216
    %vm218 = vmxor %vm199, 1
    %vm219 = vmxor %vm200, 1
    %vm220 = vmand %vm218, %vm184
    %vm221 = vmand %vm219, %vm185
    %v222 = vsub.f32 2.0, %v154
    %v223 = vsub.f32 2.0, %v161
    %v224 = vmax.f32 %v222, 0.0
    %v225 = vmax.f32 %v223, 0.0
    %v226 = vsel %vm220, %v224, 0.0
    %v227 = vsel %vm221, %v225, 0.0
    %v228 = vsel %vm205, %v226, 0.0
    %v229 = vsel %vm205, %v227, 0.0
    %v230 = vadd.f32 %v228, %v229
    %231 = vadd.xlane.f32.xlu0 %v230
    %v232 = vpop.xlane.xlu0 %231
    %v233 = vrot.slane %v232, 4
    %v234 = vadd.f32 %v232, %v233
    %v235 = vrot.slane %v234, 2
    %v236 = vadd.f32 %v234, %v235
    %v237 = vrot.slane %v236, 1
    %v238 = vadd.f32 %v236, %v237
    %s239 = vtos %v238
    %s240 = scalar_select %p24, 1.0, 2.0
    %vm241 = vcmp.eq.s32.totalorder %v164, 0
    %s242 = smul.f32 %s240, %s217
    %v243 = vstv %s242
    %v244 = vsel %vm241, %v243, 0.0
    %vm245 = vcmp.eq.s32.totalorder %v164, 1
    %s246 = smul.f32 %s240, %s239
    %v247 = vstv %s246
    %v248 = vsel %vm245, %v247, 0.0
    %v249 = vadd.f32 %v244, %v248
    %v250 = vld [vmem:[#allocation2] sm:$0xff]
    %v251 = vadd.f32 %v250, %v249
    %252 = vst [vmem:[#allocation2] sm:$0xff] %v251
    // Predicated region
    $region30: #{tpu_custom_call.1} parent=1 // pred_check
      _
    $region31: #{tpu_custom_call.1} parent=1 // pred_check_branch
      %254 = sbr.rel (0) target = $region33
    $region32: #{tpu_custom_call.1} parent=1 // pred_region
      %s256 = ssub.s32 128, 128
      %257 = vsyncadd [#allocation3], %s256
      %s259 = sshll.u32 [#allocation2], 4
      %s260 = int_to_ptr.vmem [resolvable:$true] %s259
      %262 = dma.vmem_to_hbm [thread:$0]  %s260, 128, %s6, [#allocation3]
    $region33: #{tpu_custom_call.1} parent=1 // pred_fallthru
      _
    // Predicated region
    $region34: #{tpu_custom_call.1} parent=1 // pred_check
      _
    $region35: #{tpu_custom_call.1} parent=1 // pred_check_branch
      %264 = sbr.rel (0) target = $region37
    $region36: #{tpu_custom_call.1} parent=1 // pred_region
      %265 = dma.done [#allocation3], 128
    $region37: #{tpu_custom_call.1} parent=1 // pred_fallthru
      _
    %266 = vsyncpa [#allocation3], 1

</llo_original>
